<compile_context>
chip_gen: v5e
topology: v5e:2x2
jax: 0.10.0
libtpu: 0.0.40
codegen_flags: <defaults>
</compile_context>

<pallas_src>
import functools
import math

import jax
import jax.numpy as jnp
from jax.experimental import pallas as pl
from jax.experimental.pallas import tpu as pltpu

EPS = 1e-6
LANES = 128
MAX_TILE_ROWS = 8192            # (8192, 128) f32 = 4 MiB per operand per pipeline buffer
MAX_ACC_ROWS = 64               # resident accumulator rows (8 vregs -> 8 independent add chains)
VMEM_LIMIT_BYTES = 48 * 1024 * 1024


def _charbonnier_kernel(x_ref, y_ref, o_ref, *, acc_rows, tile_rows,
                        steps_per_core, n_valid, mask_start_block, needs_mask):
    c = pl.program_id(0)          # core (parallel) axis
    i = pl.program_id(1)          # streaming (reduction) axis

    @pl.when(i == 0)
    def _():
        o_ref[...] = jnp.zeros_like(o_ref)

    x = x_ref[...].astype(jnp.float32)
    y = y_ref[...].astype(jnp.float32)
    diff = x - y
    err = jnp.sqrt(diff * diff + jnp.float32(EPS))

    def accumulate(e):
        # Lane-wise partial sums only (pure VPU adds across vregs); the wide
        # accumulator gives several independent add chains (better VALU ILP).
        o_ref[...] += e.reshape(-1, acc_rows, LANES).sum(axis=0)

    if needs_mask:
        gb = c * steps_per_core + i           # global block index

        @pl.when(gb < mask_start_block)
        def _():
            # Hot path: fully-valid blocks, no mask work at all.
            accumulate(err)

        @pl.when(gb >= mask_start_block)
        def _():
            # Zero contributions from wrapper-pad zeros, ragged-last-block
            # garbage and (clamped) fully-out-of-range blocks.  Only emitted
            # for the trailing blocks so the hot loop stays memory-bound.
            base = gb * (tile_rows * LANES)
            ridx = jax.lax.broadcasted_iota(jnp.int32, err.shape, 0)
            cidx = jax.lax.broadcasted_iota(jnp.int32, err.shape, 1)
            idx = base + ridx * LANES + cidx
            accumulate(jnp.where(idx < n_valid, err, jnp.float32(0.0)))
    else:
        accumulate(err)


def _default_num_cores():
    # Use both TensorCores on v7x-class chips (2 TC/chip); 1 elsewhere.
    try:
        kind = jax.devices()[0].device_kind.lower()
    except Exception:
        return 1
    return 2 if "v7" in kind else 1


def l1_charbonnier_loss(x, y, *, num_cores=None, max_tile_rows=MAX_TILE_ROWS):
    assert x.shape == y.shape, "X and Y must have the same shape"
    n = x.size

    xf = jnp.ravel(x)
    yf = jnp.ravel(y)

    itemsize = jnp.dtype(x.dtype).itemsize
    row_gran = max(8, 32 // itemsize)       # sublane tiling granularity per dtype

    # Pad only to a whole number of 128-lane rows (plus a minimum of
    # `row_gran` rows for tiny inputs).  For typical image tensors this is a
    # no-op (no HBM copy); the in-kernel mask zeroes any padded elements.
    # TODO(synk): for large ragged inputs jnp.pad still copies both operands;
    # summing the <128-element tail JAX-side would avoid that copy entirely.
    min_total = row_gran * LANES
    total = max(min_total, n + ((-n) % LANES))
    pad = total - n
    if pad:
        xf = jnp.pad(xf, (0, pad))
        yf = jnp.pad(yf, (0, pad))
    rows = total // LANES                   # >= row_gran by construction

    x2 = xf.reshape(rows, LANES)
    y2 = yf.reshape(rows, LANES)

    tile_rows = min(max_tile_rows, rows)
    tile_rows = max(row_gran, (tile_rows // row_gran) * row_gran)
    steps = pl.cdiv(rows, tile_rows)        # last block may be ragged (masked)
    acc_rows = math.gcd(tile_rows, MAX_ACC_ROWS)

    if num_cores is None:
        num_cores = _default_num_cores() if steps >= 2 else 1
    num_cores = int(num_cores)
    steps_per_core = pl.cdiv(steps, num_cores)

    # Mask needed iff the grid covers more elements than the original tensor
    # (wrapper pad, ragged last block, or clamped out-of-range blocks).
    block_elems = tile_rows * LANES
    covered = num_cores * steps_per_core * block_elems
    needs_mask = covered != n
    mask_start_block = n // block_elems     # first block touching invalid data

    kernel = functools.partial(
        _charbonnier_kernel,
        acc_rows=acc_rows,
        tile_rows=tile_rows,
        steps_per_core=steps_per_core,
        n_valid=n,
        mask_start_block=mask_start_block,
        needs_mask=needs_mask,
    )

    last_block = steps - 1
    if num_cores * steps_per_core == steps:
        in_idx = lambda c, i: (c * steps_per_core + i, 0)
    else:
        # Clamp trailing (fully out-of-range) blocks onto the last real block;
        # their contribution is zeroed by the in-kernel mask.
        in_idx = lambda c, i: (jnp.minimum(c * steps_per_core + i, last_block), 0)

    tile_spec = pl.BlockSpec((tile_rows, LANES), in_idx)

    cost = pl.CostEstimate(
        flops=4 * n,
        transcendentals=n,
        bytes_accessed=(x2.size * x2.dtype.itemsize
                        + y2.size * y2.dtype.itemsize
                        + num_cores * acc_rows * LANES * 4),
    )

    partial = pl.pallas_call(
        kernel,
        out_shape=jax.ShapeDtypeStruct((num_cores * acc_rows, LANES), jnp.float32),
        grid_spec=pltpu.PrefetchScalarGridSpec(
            num_scalar_prefetch=0,
            grid=(num_cores, steps_per_core),
            in_specs=[tile_spec, tile_spec],
            out_specs=pl.BlockSpec((acc_rows, LANES), lambda c, i: (c, 0)),
        ),
        compiler_params=pltpu.CompilerParams(
            dimension_semantics=("parallel", "arbitrary"),
            vmem_limit_bytes=VMEM_LIMIT_BYTES,
        ),
        cost_estimate=cost,
    )(x2, y2)

    # Single tiny cross-lane reduce over the resident partial sums.
    return jnp.sum(partial)


if __name__ == "__main__":
    key = jax.random.PRNGKey(0)
    kx, ky = jax.random.split(key)

    def ref_loss(a, b):
        return jnp.sum(jnp.sqrt((a - b) ** 2 + EPS))

    # NCHW, small shapes consistent with the module: batch=2, channels=4, 16x16.
    X = jax.random.normal(kx, (2, 4, 16, 16), dtype=jnp.float32)
    Y = jax.random.normal(ky, (2, 4, 16, 16), dtype=jnp.float32)
    loss = l1_charbonnier_loss(X, Y)
    jax.block_until_ready(loss)
    assert jnp.allclose(loss, ref_loss(X, Y), rtol=1e-5, atol=1e-5), (loss, ref_loss(X, Y))

    # Ragged shape (n not a multiple of 128 -> wrapper pad + in-kernel mask).
    X2 = jax.random.normal(kx, (3, 3, 7, 5), dtype=jnp.float32)
    Y2 = jax.random.normal(ky, (3, 3, 7, 5), dtype=jnp.float32)
    loss2 = l1_charbonnier_loss(X2, Y2)
    jax.block_until_ready(loss2)
    assert jnp.allclose(loss2, ref_loss(X2, Y2), rtol=1e-5, atol=1e-5), (loss2, ref_loss(X2, Y2))

    # Multi-block, ragged-row shape; also explicitly exercise the dual-core
    # (v7x) grid path and the clamped out-of-range-block path.  On 1-TC chips
    # the leading "parallel" axis is just a serialized loop, so this validates
    # the exact code the v7x path uses.
    X3 = jax.random.normal(kx, (2, 3, 37, 128), dtype=jnp.float32)
    Y3 = jax.random.normal(ky, (2, 3, 37, 128), dtype=jnp.float32)
    loss3a = l1_charbonnier_loss(X3, Y3)
    loss3b = l1_charbonnier_loss(X3, Y3, num_cores=2)
    loss3c = l1_charbonnier_loss(X3, Y3, num_cores=2, max_tile_rows=80)  # odd steps -> clamp path
    jax.block_until_ready((loss3a, loss3b, loss3c))
    r3 = ref_loss(X3, Y3)
    assert jnp.allclose(loss3a, r3, rtol=1e-5, atol=1e-5), (loss3a, r3)
    assert jnp.allclose(loss3b, r3, rtol=1e-5, atol=1e-5), (loss3b, r3)
    assert jnp.allclose(loss3c, r3, rtol=1e-5, atol=1e-5), (loss3c, r3)

    print("KERNEL_OK")
</pallas_src>

<mosaic_0001>
module attributes {stable_mosaic.version = 11 : i64} {
  func.func @_charbonnier_kernel(%arg0: i32, %arg1: i32, %arg2: memref<16x128xf32, #tpu.memory_space<vmem>>, %arg3: memref<16x128xf32, #tpu.memory_space<vmem>>, %arg4: memref<16x128xf32, #tpu.memory_space<vmem>>) attributes {dimension_semantics = [#tpu.dimension_semantics<parallel>, #tpu.dimension_semantics<arbitrary>], iteration_bounds = array<i64: 1, 1>, scalar_prefetch = 0 : i64, scratch_operands = 0 : i64, tpu.core_type = #tpu.core_type<tc>, window_params = [{transform_indices = @transform_0, window_bounds = array<i64: 16, 128>}, {transform_indices = @transform_1, window_bounds = array<i64: 16, 128>}, {transform_indices = @transform_2, window_bounds = array<i64: 16, 128>}]} {
    %c0_i32 = arith.constant 0 : i32
    %0 = arith.cmpi eq, %arg1, %c0_i32 : i32
    %1 = arith.extui %0 : i1 to i32
    %c0_i32_0 = arith.constant 0 : i32
    %2 = arith.cmpi ne, %1, %c0_i32_0 : i32
    scf.if %2 {
      %cst_9 = arith.constant 0.000000e+00 : f32
      %15 = vector.broadcast %cst_9 : f32 to vector<16x128xf32>
      %c0_10 = arith.constant 0 : index
      %c0_11 = arith.constant 0 : index
      %16 = vector.load %arg4[%c0_10, %c0_11] : memref<16x128xf32, #tpu.memory_space<vmem>>, vector<16x128xf32>
      tpu.vector_store %arg4[%c0_10, %c0_11], %15 {strides = array<i32>} : memref<16x128xf32, #tpu.memory_space<vmem>>, vector<16x128xf32>,
    } else {
    }
    %c0 = arith.constant 0 : index
    %c0_1 = arith.constant 0 : index
    %3 = vector.load %arg2[%c0, %c0_1] : memref<16x128xf32, #tpu.memory_space<vmem>>, vector<16x128xf32>
    %c0_2 = arith.constant 0 : index
    %c0_3 = arith.constant 0 : index
    %4 = vector.load %arg3[%c0_2, %c0_3] : memref<16x128xf32, #tpu.memory_space<vmem>>, vector<16x128xf32>
    %5 = arith.subf %3, %4 : vector<16x128xf32>
    %6 = arith.mulf %5, %5 : vector<16x128xf32>
    %cst = arith.constant 9.99999997E-7 : f32
    %7 = vector.broadcast %cst : f32 to vector<16x128xf32>
    %8 = arith.addf %6, %7 : vector<16x128xf32>
    %9 = math.sqrt %8 : vector<16x128xf32>
    %c0_4 = arith.constant 0 : index
    %c0_5 = arith.constant 0 : index
    %10 = vector.load %arg4[%c0_4, %c0_5] : memref<16x128xf32, #tpu.memory_space<vmem>>, vector<16x128xf32>
    %11 = vector.shape_cast %9 : vector<16x128xf32> to vector<1x16x128xf32>
    %cst_6 = arith.constant dense<0.000000e+00> : vector<16x128xf32>
    %12 = vector.multi_reduction <add>, %11, %cst_6 [0] : vector<1x16x128xf32> to vector<16x128xf32>
    %13 = arith.addf %10, %12 : vector<16x128xf32>
    %c0_7 = arith.constant 0 : index
    %c0_8 = arith.constant 0 : index
    %14 = vector.load %arg4[%c0_7, %c0_8] : memref<16x128xf32, #tpu.memory_space<vmem>>, vector<16x128xf32>
    tpu.vector_store %arg4[%c0_7, %c0_8], %13 {strides = array<i32>} : memref<16x128xf32, #tpu.memory_space<vmem>>, vector<16x128xf32>,
    return
  }
  func.func @transform_0(%arg0: i32, %arg1: i32) -> (i32, i32) {
    %c1_i32 = arith.constant 1 : i32
    %0 = arith.muli %arg0, %c1_i32 : i32
    %1 = arith.addi %0, %arg1 : i32
    %c0_i32 = arith.constant 0 : i32
    %c0_i32_0 = arith.constant 0 : i32
    return %1, %c0_i32 : i32, i32
  }
  func.func @transform_1(%arg0: i32, %arg1: i32) -> (i32, i32) {
    %c1_i32 = arith.constant 1 : i32
    %0 = arith.muli %arg0, %c1_i32 : i32
    %1 = arith.addi %0, %arg1 : i32
    %c0_i32 = arith.constant 0 : i32
    %c0_i32_0 = arith.constant 0 : i32
    return %1, %c0_i32 : i32, i32
  }
  func.func @transform_2(%arg0: i32, %arg1: i32) -> (i32, i32) {
    %c0_i32 = arith.constant 0 : i32
    %c0_i32_0 = arith.constant 0 : i32
    return %arg0, %c0_i32 : i32, i32
  }
}

</mosaic_0001>

<llo_original>
// kernel: tpu_custom_call.1
$region0: #{tpu_custom_call.1}
  #allocation0 [shape = 'u32[]', space=smem, size = 0x4, offset = 0x4, fixed_abs, tag = 'smem constant byte address 0x4 - core index']
  #allocation1 [shape = 'u32[72,128]{1,0:T(1,128)}', space=vmem, size = 0x9000, scoped, tag = 'internal scratch']
  %s0 = inlined_call_operand.hbm [shape: f32[16,128], index: 0, kind: input, shape index: {}]
  %s1 = inlined_call_operand.hbm [shape: f32[16,128], index: 1, kind: input, shape index: {}]
  %s2 = inlined_call_operand.hbm [shape: f32[16,128], index: 2, kind: output, shape index: {}]
  %s3 = sld [smem:[#allocation0]]
  $region30: #{tpu_custom_call.1} parent=0
    _
  %s5 = ssub.s32 1, %s3
  %s6 = scalar_select 0, %s5, %s3
  $region1: #{tpu_custom_call.1} parent=0
    #allocation2 [shape = 'u8[8192]{0}', space=vmem, size = 0x2000, scoped, tag = 'input window, operand 0, single buffered']
    #allocation3 [shape = 's32[1]{0}', space=sflag, size = 0x4, scoped, tag = 'scoped memory for tpu_custom_call.1']
    #allocation4 [shape = 's32[1]{0}', space=sflag, size = 0x4, scoped, tag = 'scoped memory for tpu_custom_call.1']
    #allocation5 [shape = 'u8[8192]{0}', space=vmem, size = 0x2000, scoped, tag = 'input window, operand 1, single buffered']
    #allocation6 [shape = 's32[1]{0}', space=sflag, size = 0x4, scoped, tag = 'scoped memory for tpu_custom_call.1']
    #allocation7 [shape = 'u8[8192]{0}', space=vmem, size = 0x2000, scoped, tag = 'output window, operand 0, single buffered']
    %7 = vsyncpa [#allocation3], 0
    %8 = vsyncpa [#allocation6], 0
    %9 = vsyncpa [#allocation4], 0
    // Predicated region
    $region2: #{tpu_custom_call.1} parent=1 // pred_check
      _
    $region3: #{tpu_custom_call.1} parent=1 // pred_check_branch
      %11 = sbr.rel (0) target = $region5
    $region4: #{tpu_custom_call.1} parent=1 // pred_region
      %s12 = sadd.s32 0, 0
      %s13 = smul.u32 2, %s12
      %15 = vsyncadd [#allocation3], 0
      %s16 = smul.addr %s13, 8
      %s17 = scalar_lea.hbm %s0, %s16
      %s18 = sshll.u32 %s17, 4
      %s19 = int_to_ptr.hbm [resolvable:$true] %s18
      %s20 = sshll.u32 [#allocation2], 4
      %s21 = int_to_ptr.vmem [resolvable:$true] %s20
      %26 = dma.hbm_to_vmem [thread:$0]  %s19, 256, %s21, [#allocation3], 128, 128, 8
    $region5: #{tpu_custom_call.1} parent=1 // pred_fallthru
      _
    // Predicated region
    $region6: #{tpu_custom_call.1} parent=1 // pred_check
      _
    $region7: #{tpu_custom_call.1} parent=1 // pred_check_branch
      %28 = sbr.rel (0) target = $region9
    $region8: #{tpu_custom_call.1} parent=1 // pred_region
      %s29 = sadd.s32 0, 0
      %s30 = smul.u32 2, %s29
      %32 = vsyncadd [#allocation6], 0
      %s33 = smul.addr %s30, 8
      %s34 = scalar_lea.hbm %s1, %s33
      %s35 = sshll.u32 %s34, 4
      %s36 = int_to_ptr.hbm [resolvable:$true] %s35
      %s37 = sshll.u32 [#allocation5], 4
      %s38 = int_to_ptr.vmem [resolvable:$true] %s37
      %43 = dma.hbm_to_vmem [thread:$0]  %s36, 256, %s38, [#allocation6], 128, 128, 8
    $region9: #{tpu_custom_call.1} parent=1 // pred_fallthru
      _
    // Predicated region
    $region10: #{tpu_custom_call.1} parent=1 // pred_check
      _
    $region11: #{tpu_custom_call.1} parent=1 // pred_check_branch
      %45 = sbr.rel (0) target = $region13
    $region12: #{tpu_custom_call.1} parent=1 // pred_region
      %47 = dma.done [#allocation3], 256
    $region13: #{tpu_custom_call.1} parent=1 // pred_fallthru
      _
    // Predicated region
    $region14: #{tpu_custom_call.1} parent=1 // pred_check
      _
    $region15: #{tpu_custom_call.1} parent=1 // pred_check_branch
      %49 = sbr.rel (0) target = $region17
    $region16: #{tpu_custom_call.1} parent=1 // pred_region
      %51 = dma.done [#allocation6], 256
    $region17: #{tpu_custom_call.1} parent=1 // pred_fallthru
      _
    %s52 = sadd.s32 0, 0
    %s53 = smul.u32 2, %s52
    %s54 = sadd.s32 0, 0
    %s55 = smul.u32 2, %s54
    %p56 = scmp.eq.s32.totalorder 0, 0
    // Predicated region
    $region18: #{tpu_custom_call.1} parent=1 // pred_check
      %p57 = pneg %p56
    $region19: #{tpu_custom_call.1} parent=1 // pred_check_branch
      %59 = sbr.rel (%p57) target = $region21
    $region20: #{tpu_custom_call.1} parent=1 // pred_region
      %60 = vst [vmem:[#allocation7] sm:$0xff] 0.0
      %61 = vst [vmem:[#allocation7 + $0x8] sm:$0xff] 0.0
    $region21: #{tpu_custom_call.1} parent=1 // pred_fallthru
      _
    %v62 = vld [vmem:[#allocation2] sm:$0xff]
    %v63 = vld [vmem:[#allocation2 + $0x8] sm:$0xff]
    %v64 = vld [vmem:[#allocation5] sm:$0xff]
    %v65 = vld [vmem:[#allocation5 + $0x8] sm:$0xff]
    %v66 = vsub.f32 %v62, %v64
    %v67 = vsub.f32 %v63, %v65
    %v68 = vmul.f32 %v66, %v66
    %v69 = vmul.f32 %v67, %v67
    %v70 = vadd.f32 %v68, 1e-06
    %v71 = vadd.f32 %v69, 1e-06
    %v72 = vrsqrt.pop %v70
    %v73 = vmul.f32 %v72, %v70
    %v74 = vmul.f32 %v73, %v72
    %v75 = vmul.f32 0.5, %v74
    %v76 = vsub.f32 1.5, %v75
    %v77 = vmul.f32 %v72, %v76
    %v78 = vmul.f32 %v70, %v77
    %vm79 = vcmp.eq.f32.partialorder %v70, inf
    %v80 = vsel %vm79, %v70, %v78
    %vm81 = vcmp.eq.f32.partialorder %v70, 0.0
    %v82 = vand.u32 %v70, 2147483648
    %v83 = vsel %vm81, %v82, %v80
    %v84 = vrsqrt.pop %v71
    %v85 = vmul.f32 %v84, %v71
    %v86 = vmul.f32 %v85, %v84
    %v87 = vmul.f32 0.5, %v86
    %v88 = vsub.f32 1.5, %v87
    %v89 = vmul.f32 %v84, %v88
    %v90 = vmul.f32 %v71, %v89
    %vm91 = vcmp.eq.f32.partialorder %v71, inf
    %v92 = vsel %vm91, %v71, %v90
    %vm93 = vcmp.eq.f32.partialorder %v71, 0.0
    %v94 = vand.u32 %v71, 2147483648
    %v95 = vsel %vm93, %v94, %v92
    %v96 = vld [vmem:[#allocation7] sm:$0xff]
    %v97 = vld [vmem:[#allocation7 + $0x8] sm:$0xff]
    %v98 = vadd.f32 %v83, 0.0
    %v99 = vadd.f32 %v95, 0.0
    %v100 = vadd.f32 %v96, %v98
    %v101 = vadd.f32 %v97, %v99
    %102 = vst [vmem:[#allocation7] sm:$0xff] %v100
    %103 = vst [vmem:[#allocation7 + $0x8] sm:$0xff] %v101
    // Predicated region
    $region22: #{tpu_custom_call.1} parent=1 // pred_check
      _
    $region23: #{tpu_custom_call.1} parent=1 // pred_check_branch
      %105 = sbr.rel (0) target = $region25
    $region24: #{tpu_custom_call.1} parent=1 // pred_region
      %107 = vsyncadd [#allocation4], 0
      %s108 = sshll.u32 [#allocation7], 4
      %s109 = int_to_ptr.vmem [resolvable:$true] %s108
      %s110 = sshll.u32 %s2, 4
      %s111 = int_to_ptr.hbm [resolvable:$true] %s110
      %116 = dma.vmem_to_hbm [thread:$0]  %s109, 256, %s111, [#allocation4], 128, 128, 8
    $region25: #{tpu_custom_call.1} parent=1 // pred_fallthru
      _
    // Predicated region
    $region26: #{tpu_custom_call.1} parent=1 // pred_check
      _
    $region27: #{tpu_custom_call.1} parent=1 // pred_check_branch
      %118 = sbr.rel (0) target = $region29
    $region28: #{tpu_custom_call.1} parent=1 // pred_region
      %120 = dma.done [#allocation4], 256
    $region29: #{tpu_custom_call.1} parent=1 // pred_fallthru
      _
    %121 = vsyncpa [#allocation3], 1
    %122 = vsyncpa [#allocation6], 1
    %123 = vsyncpa [#allocation4], 1

</llo_original>
